<compile_context>
chip_gen: v7x
topology: tpu7x:2x2x1
jax: 0.10.0
libtpu: 0.0.40
codegen_flags: <defaults>
</compile_context>

<pallas_src>
import functools

import jax
import jax.numpy as jnp
from jax.experimental import pallas as pl
from jax.experimental.pallas import tpu as pltpu

BN_EPS = 1e-5
NUM_SPLITS = 2                        # leading "parallel" grid axis (v7x: one per TensorCore)
TARGET_TILE_BYTES = 4 * 1024 * 1024   # fp32 feat bytes per pipeline buffer


def _round_up(x, m):
    return (x + m - 1) // m * m


# ---------------------------------------------------------------------------
# Kernel 1: streaming segment-sum pooling (the HBM-bound part).
#   partials[c] = sum over this split's feat rows, masked per batch segment.
# ---------------------------------------------------------------------------
def _pool_kernel(starts_ref, ends_ref, feat_ref, part_ref, col_ref, *,
                 n_total, tiles_per_split, any_partial):
    c = pl.program_id(0)
    i = pl.program_id(1)
    tile_n = feat_ref.shape[0]

    @pl.when(i == 0)
    def _init():
        part_ref[...] = jnp.zeros_like(part_ref)
        col_ref[...] = jax.lax.broadcasted_iota(jnp.int32, col_ref.shape, 1)

    # Nominal (unclamped) first row of this tile.  The feat index_map clamps
    # the block index, so overhanging tiles re-read the last block but the
    # masking below guarantees they contribute exactly zero.
    base = (c * tiles_per_split + i) * tile_n
    col = base + col_ref[...]
    seg_mask = (col >= starts_ref[...]) & (col < ends_ref[...])
    weights = jnp.where(seg_mask, 1.0, 0.0).astype(jnp.bfloat16)   # exact 0/1

    def _accumulate(feat_tile):
        part_ref[...] += jnp.dot(weights, feat_tile.astype(jnp.bfloat16),
                                 preferred_element_type=jnp.float32)

    if not any_partial:
        # Every tile lies fully inside [0, N): no row masking anywhere.
        _accumulate(feat_ref[...])
    else:
        needs_mask = base + tile_n > n_total

        @pl.when(jnp.logical_not(needs_mask))
        def _full_tile():
            _accumulate(feat_ref[...])

        @pl.when(needs_mask)
        def _partial_tile():
            # Zero rows beyond N so stale VMEM / NaNs cannot leak via 0 * garbage.
            row = base + jax.lax.broadcasted_iota(jnp.int32, (tile_n, 1), 0)
            f = feat_ref[...]
            _accumulate(jnp.where(row < n_total, f, jnp.zeros_like(f)))


# ---------------------------------------------------------------------------
# Kernel 2: tiny finalize head — combine partials, mean-scale, BN-folded MLP.
# ---------------------------------------------------------------------------
def _head_kernel(part_ref, invcnt_ref, w1_ref, b1_ref, w2_ref, b2_ref,
                 w3_ref, b3_ref, out_ref):
    pooled = part_ref[0]
    for s in range(1, part_ref.shape[0]):          # unrolled at trace time
        pooled = pooled + part_ref[s]
    pooled = pooled * invcnt_ref[...]               # segment mean
    h = jnp.dot(pooled, w1_ref[...], preferred_element_type=jnp.float32) + b1_ref[...]
    h = jnp.maximum(h, 0.0)                         # Dropout(p=0.5) == identity in eval
    h = jnp.dot(h, w2_ref[...], preferred_element_type=jnp.float32) + b2_ref[...]
    h = jnp.maximum(h, 0.0)
    out_ref[...] = jnp.dot(h, w3_ref[...], preferred_element_type=jnp.float32) + b3_ref[...]


def default_classifier_forward(feat, offset, params, *, tile_rows=None):
    """feat: [N, D] float32 backbone features; offset: [B] int32 CSR end offsets."""
    N, D = feat.shape
    B = offset.shape[0]
    H1 = params["w1"].shape[1]
    H2 = params["w2"].shape[1]
    C = params["w3"].shape[1]

    B_pad = _round_up(max(B, 8), 8)          # sublane-friendly batch
    C_pad = _round_up(C, 128)                # lane-dense output store

    # ---- D-aware tile size: ~TARGET_TILE_BYTES of fp32 feat per buffer ----
    if tile_rows is None:
        tile_rows = max(512, (TARGET_TILE_BYTES // (D * 4)) // 512 * 512)
    else:
        tile_rows = max(8, tile_rows // 8 * 8)
    tile_n = N if N <= tile_rows else tile_rows
    n_tiles = pl.cdiv(N, tile_n)
    num_splits = NUM_SPLITS if n_tiles >= NUM_SPLITS else 1
    tiles_per_split = pl.cdiv(n_tiles, num_splits)
    covered = num_splits * tiles_per_split * tile_n
    any_partial = covered > N                # static: emit mask branch at all?

    # ---- segment bounds (padded batch rows become empty segments [N, N)) ----
    indptr = jnp.concatenate([jnp.zeros((1,), jnp.int32), offset.astype(jnp.int32)])
    starts = jnp.full((B_pad,), N, jnp.int32).at[:B].set(indptr[:-1]).reshape(B_pad, 1)
    ends = jnp.full((B_pad,), N, jnp.int32).at[:B].set(indptr[1:]).reshape(B_pad, 1)
    counts = jnp.maximum((ends - starts).astype(jnp.float32), 1.0)
    inv_cnt = 1.0 / counts                                            # [B_pad, 1] fp32

    # ---- fold eval-mode BatchNorm1d into the adjacent Linear layers ----
    s1 = params["g1"] * jax.lax.rsqrt(params["v1"] + BN_EPS)          # [1, H1]
    w1f = params["w1"] * s1
    b1f = (params["b1"] - params["m1"]) * s1 + params["be1"]
    s2 = params["g2"] * jax.lax.rsqrt(params["v2"] + BN_EPS)          # [1, H2]
    w2f = params["w2"] * s2
    b2f = (params["b2"] - params["m2"]) * s2 + params["be2"]

    # Pad classifier output dim to 128 lanes (unmasked vst); slice after the call.
    w3p = jnp.pad(params["w3"], ((0, 0), (0, C_pad - C)))
    b3p = jnp.pad(params["b3"], ((0, 0), (0, C_pad - C)))

    # ---- kernel 1: streaming pooling over N -------------------------------
    last_block = n_tiles - 1

    def feat_map(c, i):
        g = c * tiles_per_split + i
        return (jnp.minimum(g, last_block), 0)     # clamp overhang tiles

    pool_kernel = functools.partial(
        _pool_kernel, n_total=N, tiles_per_split=tiles_per_split,
        any_partial=any_partial)

    pool_flops = 2 * B_pad * covered * D
    pool_bytes = N * D * 4 + num_splits * B_pad * D * 4 + 2 * B_pad * 4

    partials = pl.pallas_call(
        pool_kernel,
        out_shape=jax.ShapeDtypeStruct((num_splits, B_pad, D), jnp.float32),
        grid_spec=pltpu.PrefetchScalarGridSpec(
            num_scalar_prefetch=0,
            grid=(num_splits, tiles_per_split),
            in_specs=[
                pl.BlockSpec((B_pad, 1), lambda c, i: (0, 0)),    # starts (resident)
                pl.BlockSpec((B_pad, 1), lambda c, i: (0, 0)),    # ends   (resident)
                pl.BlockSpec((tile_n, D), feat_map),              # feat tile (streamed)
            ],
            out_specs=pl.BlockSpec((None, B_pad, D), lambda c, i: (c, 0, 0)),
            scratch_shapes=[pltpu.VMEM((B_pad, tile_n), jnp.int32)],  # hoisted col iota
        ),
        compiler_params=pltpu.CompilerParams(
            dimension_semantics=("parallel", "arbitrary")),
        cost_estimate=pl.CostEstimate(
            flops=pool_flops, transcendentals=0, bytes_accessed=pool_bytes),
    )(starts, ends, feat)

    # ---- kernel 2: combine partials + BN-folded MLP head ------------------
    head_specs = [
        pl.BlockSpec((num_splits, B_pad, D), lambda i: (0, 0, 0)),   # partial sums
        pl.BlockSpec((B_pad, 1), lambda i: (0, 0)),                  # 1/count
        pl.BlockSpec((D, H1), lambda i: (0, 0)),                     # w1 (BN-folded)
        pl.BlockSpec((1, H1), lambda i: (0, 0)),                     # b1 (BN-folded)
        pl.BlockSpec((H1, H2), lambda i: (0, 0)),                    # w2 (BN-folded)
        pl.BlockSpec((1, H2), lambda i: (0, 0)),                     # b2 (BN-folded)
        pl.BlockSpec((H2, C_pad), lambda i: (0, 0)),                 # w3 (lane-padded)
        pl.BlockSpec((1, C_pad), lambda i: (0, 0)),                  # b3 (lane-padded)
    ]
    out = pl.pallas_call(
        _head_kernel,
        out_shape=jax.ShapeDtypeStruct((B_pad, C_pad), jnp.float32),
        grid_spec=pltpu.PrefetchScalarGridSpec(
            num_scalar_prefetch=0,
            grid=(1,),
            in_specs=head_specs,
            out_specs=pl.BlockSpec((B_pad, C_pad), lambda i: (0, 0)),
        ),
        compiler_params=pltpu.CompilerParams(
            dimension_semantics=("arbitrary",)),
    )(partials, inv_cnt, w1f, b1f, w2f, b2f, w3p, b3p)

    return out[:B, :C]


def ref_forward(feat, offset, params):
    """Pure-JAX reference of the same eval-mode forward (BN un-folded)."""
    N = feat.shape[0]
    indptr = jnp.concatenate([jnp.zeros((1,), jnp.int32), offset.astype(jnp.int32)])
    idx = jnp.arange(N)[None, :]
    starts = indptr[:-1][:, None]
    ends = indptr[1:][:, None]
    mask = (idx >= starts) & (idx < ends)
    counts = jnp.maximum((ends - starts).astype(jnp.float32), 1.0)
    feat32 = feat.astype(jnp.bfloat16).astype(jnp.float32)   # match kernel's bf16 MXU rounding
    pooled = (mask.astype(jnp.float32) @ feat32) / counts

    def bn(x, g, be, m, v):
        return (x - m) * jax.lax.rsqrt(v + BN_EPS) * g + be

    h = pooled @ params["w1"] + params["b1"]
    h = jnp.maximum(bn(h, params["g1"], params["be1"], params["m1"], params["v1"]), 0.0)
    h = h @ params["w2"] + params["b2"]
    h = jnp.maximum(bn(h, params["g2"], params["be2"], params["m2"], params["v2"]), 0.0)
    return h @ params["w3"] + params["b3"]


def init_params(key, embed_dim, num_classes):
    h1, h2 = 256, 128   # hard-coded in cls_head
    ks = jax.random.split(key, 12)

    def lin(kw, kb, fan_in, fan_out):
        bound = 1.0 / jnp.sqrt(fan_in)
        w = jax.random.uniform(kw, (fan_in, fan_out), jnp.float32, -bound, bound)
        b = jax.random.uniform(kb, (1, fan_out), jnp.float32, -bound, bound)
        return w, b

    w1, b1 = lin(ks[0], ks[1], embed_dim, h1)
    w2, b2 = lin(ks[2], ks[3], h1, h2)
    w3, b3 = lin(ks[4], ks[5], h2, num_classes)

    params = dict(w1=w1, b1=b1, w2=w2, b2=b2, w3=w3, b3=b3)
    # BatchNorm1d (eval): deterministic gamma/beta + running stats.
    params["g1"] = 1.0 + 0.1 * jax.random.normal(ks[6], (1, h1), jnp.float32)
    params["be1"] = 0.1 * jax.random.normal(ks[7], (1, h1), jnp.float32)
    params["m1"] = 0.05 * jax.random.normal(ks[8], (1, h1), jnp.float32)
    params["v1"] = jnp.abs(1.0 + 0.1 * jax.random.normal(ks[9], (1, h1), jnp.float32))
    params["g2"] = 1.0 + 0.1 * jax.random.normal(ks[10], (1, h2), jnp.float32)
    params["be2"] = 0.1 * jax.random.normal(ks[11], (1, h2), jnp.float32)
    params["m2"] = jnp.zeros((1, h2), jnp.float32)
    params["v2"] = jnp.ones((1, h2), jnp.float32)
    return params


if __name__ == "__main__":
    key = jax.random.PRNGKey(0)
    k_feat, k_par = jax.random.split(key)

    B = 4                 # number of point clouds in the batch
    N = 1000              # total points
    EMBED_DIM = 64        # backbone_embed_dim (small for the example)
    NUM_CLASSES = 40

    # Simulated backbone output features and CSR end offsets.
    feat = jax.random.normal(k_feat, (N, EMBED_DIM), jnp.float32)
    offset = jnp.array([180, 420, 690, 1000], dtype=jnp.int32)

    params = init_params(k_par, EMBED_DIM, NUM_CLASSES)
    ref = ref_forward(feat, offset, params)

    # Default production-style tiling (single full-N tile here since N is small).
    logits = default_classifier_forward(feat, offset, params)
    jax.block_until_ready(logits)
    assert logits.shape == (B, NUM_CLASSES)
    assert jnp.allclose(logits, ref, rtol=1e-4, atol=1e-4), "mismatch vs reference (default tile)"

    # Forced small tile: exercises multi-tile streaming, the 2-way split,
    # the gated partial-tile mask branch and the clamped overhang tile.
    logits_small = default_classifier_forward(feat, offset, params, tile_rows=384)
    jax.block_until_ready(logits_small)
    assert jnp.allclose(logits_small, ref, rtol=1e-4, atol=1e-4), "mismatch vs reference (small tile)"

    print("KERNEL_OK")
</pallas_src>

<mosaic_0001>
module attributes {stable_mosaic.version = 11 : i64} {
  func.func @_pool_kernel(%arg0: i32, %arg1: i32, %arg2: memref<8x1xi32, #tpu.memory_space<vmem>>, %arg3: memref<8x1xi32, #tpu.memory_space<vmem>>, %arg4: memref<1000x64xf32, #tpu.memory_space<vmem>>, %arg5: memref<1x8x64xf32, #tpu.memory_space<vmem>>, %arg6: memref<8x1000xi32, #tpu.memory_space<vmem>>) attributes {dimension_semantics = [#tpu.dimension_semantics<parallel>, #tpu.dimension_semantics<arbitrary>], iteration_bounds = array<i64: 1, 1>, scalar_prefetch = 0 : i64, scratch_operands = 1 : i64, tpu.core_type = #tpu.core_type<tc>, window_params = [{pipeline_mode = #tpu.pipeline_mode<synchronous>, transform_indices = @transform_0, window_bounds = array<i64: 8, 1>}, {pipeline_mode = #tpu.pipeline_mode<synchronous>, transform_indices = @transform_1, window_bounds = array<i64: 8, 1>}, {transform_indices = @transform_2, window_bounds = array<i64: 1000, 64>}, {transform_indices = @transform_3, window_bounds = array<i64: 1, 8, 64>}]} {
    %c0_i32 = arith.constant 0 : i32
    %0 = arith.cmpi eq, %arg1, %c0_i32 : i32
    %1 = arith.extui %0 : i1 to i32
    %c0_i32_0 = arith.constant 0 : i32
    %2 = arith.cmpi ne, %1, %c0_i32_0 : i32
    scf.if %2 {
      %cst_16 = arith.constant 0.000000e+00 : f32
      %29 = vector.broadcast %cst_16 : f32 to vector<8x64xf32>
      %c0_17 = arith.constant 0 : index
      %c0_18 = arith.constant 0 : index
      %c0_19 = arith.constant 0 : index
      %30 = vector.load %arg5[%c0_17, %c0_18, %c0_19] : memref<1x8x64xf32, #tpu.memory_space<vmem>>, vector<1x8x64xf32>
      %31 = vector.shape_cast %30 : vector<1x8x64xf32> to vector<8x64xf32>
      %32 = vector.shape_cast %29 : vector<8x64xf32> to vector<1x8x64xf32>
      tpu.vector_store %arg5[%c0_17, %c0_18, %c0_19], %32 {strides = array<i32>} : memref<1x8x64xf32, #tpu.memory_space<vmem>>, vector<1x8x64xf32>,
      %33 = tpu.iota {dimensions = array<i32: 1>} : vector<8x1000xi32>
      %c0_20 = arith.constant 0 : index
      %c0_21 = arith.constant 0 : index
      %34 = vector.load %arg6[%c0_20, %c0_21] : memref<8x1000xi32, #tpu.memory_space<vmem>>, vector<8x1000xi32>
      tpu.vector_store %arg6[%c0_20, %c0_21], %33 {strides = array<i32>} : memref<8x1000xi32, #tpu.memory_space<vmem>>, vector<8x1000xi32>,
    } else {
    }
    %c1_i32 = arith.constant 1 : i32
    %3 = arith.muli %arg0, %c1_i32 : i32
    %4 = arith.addi %3, %arg1 : i32
    %c1000_i32 = arith.constant 1000 : i32
    %5 = arith.muli %4, %c1000_i32 : i32
    %c0 = arith.constant 0 : index
    %c0_1 = arith.constant 0 : index
    %6 = vector.load %arg6[%c0, %c0_1] : memref<8x1000xi32, #tpu.memory_space<vmem>>, vector<8x1000xi32>
    %7 = vector.broadcast %5 : i32 to vector<8x1000xi32>
    %8 = arith.addi %7, %6 : vector<8x1000xi32>
    %c0_2 = arith.constant 0 : index
    %c0_3 = arith.constant 0 : index
    %9 = vector.load %arg2[%c0_2, %c0_3] : memref<8x1xi32, #tpu.memory_space<vmem>>, vector<8x1xi32>
    %10 = vector.broadcast %9 : vector<8x1xi32> to vector<8x1000xi32>
    %11 = arith.cmpi sge, %8, %10 : vector<8x1000xi32>
    %c0_4 = arith.constant 0 : index
    %c0_5 = arith.constant 0 : index
    %12 = vector.load %arg3[%c0_4, %c0_5] : memref<8x1xi32, #tpu.memory_space<vmem>>, vector<8x1xi32>
    %13 = vector.broadcast %12 : vector<8x1xi32> to vector<8x1000xi32>
    %14 = arith.cmpi slt, %8, %13 : vector<8x1000xi32>
    %15 = arith.andi %11, %14 : vector<8x1000xi1>
    %cst = arith.constant 1.000000e+00 : f32
    %cst_6 = arith.constant 0.000000e+00 : f32
    %16 = vector.broadcast %cst : f32 to vector<8x1000xf32>
    %17 = vector.broadcast %cst_6 : f32 to vector<8x1000xf32>
    %18 = arith.select %15, %16, %17 : vector<8x1000xi1>, vector<8x1000xf32>
    %19 = arith.truncf %18 : vector<8x1000xf32> to vector<8x1000xbf16>
    %c0_7 = arith.constant 0 : index
    %c0_8 = arith.constant 0 : index
    %20 = vector.load %arg4[%c0_7, %c0_8] : memref<1000x64xf32, #tpu.memory_space<vmem>>, vector<1000x64xf32>
    %c0_9 = arith.constant 0 : index
    %c0_10 = arith.constant 0 : index
    %c0_11 = arith.constant 0 : index
    %21 = vector.load %arg5[%c0_9, %c0_10, %c0_11] : memref<1x8x64xf32, #tpu.memory_space<vmem>>, vector<1x8x64xf32>
    %22 = vector.shape_cast %21 : vector<1x8x64xf32> to vector<8x64xf32>
    %23 = arith.truncf %20 : vector<1000x64xf32> to vector<1000x64xbf16>
    %cst_12 = arith.constant dense<0.000000e+00> : vector<8x64xf32>
    %24 = tpu.matmul %19, %23, %cst_12 {dimension_numbers = #tpu.dot_dimension_numbers<[1], [0], [0], [1], [0, 0, 1, 1], [], []>} : vector<8x1000xbf16>, vector<1000x64xbf16>, vector<8x64xf32> -> vector<8x64xf32>
    %25 = arith.addf %22, %24 : vector<8x64xf32>
    %c0_13 = arith.constant 0 : index
    %c0_14 = arith.constant 0 : index
    %c0_15 = arith.constant 0 : index
    %26 = vector.load %arg5[%c0_13, %c0_14, %c0_15] : memref<1x8x64xf32, #tpu.memory_space<vmem>>, vector<1x8x64xf32>
    %27 = vector.shape_cast %26 : vector<1x8x64xf32> to vector<8x64xf32>
    %28 = vector.shape_cast %25 : vector<8x64xf32> to vector<1x8x64xf32>
    tpu.vector_store %arg5[%c0_13, %c0_14, %c0_15], %28 {strides = array<i32>} : memref<1x8x64xf32, #tpu.memory_space<vmem>>, vector<1x8x64xf32>,
    return
  }
  func.func @transform_0(%arg0: i32, %arg1: i32) -> (i32, i32) {
    %c0_i32 = arith.constant 0 : i32
    %c0_i32_0 = arith.constant 0 : i32
    %c0_i32_1 = arith.constant 0 : i32
    return %c0_i32, %c0_i32_0 : i32, i32
  }
  func.func @transform_1(%arg0: i32, %arg1: i32) -> (i32, i32) {
    %c0_i32 = arith.constant 0 : i32
    %c0_i32_0 = arith.constant 0 : i32
    %c0_i32_1 = arith.constant 0 : i32
    return %c0_i32, %c0_i32_0 : i32, i32
  }
  func.func @transform_2(%arg0: i32, %arg1: i32) -> (i32, i32) {
    %c1_i32 = arith.constant 1 : i32
    %0 = arith.muli %arg0, %c1_i32 : i32
    %1 = arith.addi %0, %arg1 : i32
    %c0_i32 = arith.constant 0 : i32
    %2 = arith.minsi %1, %c0_i32 : i32
    %c0_i32_0 = arith.constant 0 : i32
    %c0_i32_1 = arith.constant 0 : i32
    return %2, %c0_i32_0 : i32, i32
  }
  func.func @transform_3(%arg0: i32, %arg1: i32) -> (i32, i32, i32) {
    %c0_i32 = arith.constant 0 : i32
    %c0_i32_0 = arith.constant 0 : i32
    %c0_i32_1 = arith.constant 0 : i32
    return %arg0, %c0_i32, %c0_i32_0 : i32, i32, i32
  }
}

</mosaic_0001>

<llo_original>
// kernel: tpu_custom_call.1
$region0: #{tpu_custom_call.1}
  #allocation0 [shape = 'u32[]', space=smem, size = 0x4, offset = 0x4, fixed_abs, tag = 'smem constant byte address 0x4 - core index']
  #allocation1 [shape = 'u32[144,128]{1,0:T(1,128)}', space=vmem, size = 0x12000, scoped, tag = 'internal scratch']
  #allocation2 [shape = 's32[8,1000]{1,0:T(8,128)}', space=vmem, size = 0x8000, scoped, tag = 'scratch operand']
  %s0 = inlined_call_operand.vmem [shape: s32[8,1], index: 0, kind: input, shape index: {}]
  %s1 = inlined_call_operand.vmem [shape: s32[8,1], index: 1, kind: input, shape index: {}]
  %s2 = inlined_call_operand.vmem [shape: f32[1000,64], index: 2, kind: input, shape index: {}]
  %s3 = inlined_call_operand.hbm [shape: f32[1,8,64], index: 3, kind: output, shape index: {}]
  %s4 = sld [smem:[#allocation0]]
  $region26: #{tpu_custom_call.1} parent=0
    _
  %s6 = ssub.s32 1, %s4
  %s7 = scalar_select 0, %s6, %s4
  $region1: #{tpu_custom_call.1} parent=0
    #allocation3 [shape = 'u8[4096]{0}', space=vmem, size = 0x1000, scoped, tag = 'output window, operand 0, single buffered']
    #allocation4 [shape = 's32[1]{0}', space=sflag, size = 0x4, scoped, tag = 'scoped memory for tpu_custom_call.1']
    %8 = vsyncpa [#allocation4], 0
    // Predicated region
    $region2: #{tpu_custom_call.1} parent=1 // pred_check
      _
    $region3: #{tpu_custom_call.1} parent=1 // pred_check_branch
      %10 = sbr.rel (0) target = $region5
    $region4: #{tpu_custom_call.1} parent=1 // pred_region
      _
    $region5: #{tpu_custom_call.1} parent=1 // pred_fallthru
      _
    // Predicated region
    $region6: #{tpu_custom_call.1} parent=1 // pred_check
      _
    $region7: #{tpu_custom_call.1} parent=1 // pred_check_branch
      %12 = sbr.rel (0) target = $region9
    $region8: #{tpu_custom_call.1} parent=1 // pred_region
      _
    $region9: #{tpu_custom_call.1} parent=1 // pred_fallthru
      _
    // Predicated region
    $region10: #{tpu_custom_call.1} parent=1 // pred_check
      _
    $region11: #{tpu_custom_call.1} parent=1 // pred_check_branch
      %14 = sbr.rel (0) target = $region13
    $region12: #{tpu_custom_call.1} parent=1 // pred_region
      %s15 = sadd.s32 0, 0
      %p16 = scmp.lt.s32.totalorder %s15, 0
      %s17 = scalar_select %p16, %s15, 0
      %s18 = smul.u32 125, %s17
      %p19 = scmp.lt.s32.totalorder %s18, 124
      %s20 = scalar_select %p19, %s18, 124
      %s21 = smul.addr %s20, 8
      %s22 = scalar_lea.vmem %s2, %s21
      %s23 = sadd.s32 0, 0
      %p24 = scmp.lt.s32.totalorder %s23, 0
      %s25 = scalar_select %p24, %s23, 0
      %s26 = smul.u32 125, %s25
    $region13: #{tpu_custom_call.1} parent=1 // pred_fallthru
      _
    %s27 = sadd.s32 0, 0
    %p28 = scmp.lt.s32.totalorder %s27, 0
    %s29 = scalar_select %p28, %s27, 0
    %s30 = smul.u32 125, %s29
    %p31 = scmp.lt.s32.totalorder %s30, 124
    %s32 = scalar_select %p31, %s30, 124
    %s33 = smul.addr %s32, 8
    %s34 = scalar_lea.vmem %s2, %s33
    %s35 = sadd.s32 0, 0
    %p36 = scmp.lt.s32.totalorder %s35, 0
    %s37 = scalar_select %p36, %s35, 0
    %s38 = smul.u32 125, %s37
    %p39 = scmp.lt.s32.totalorder %s38, 124
    %s40 = scalar_select %p39, %s38, 124
    %s41 = smul.addr %s40, 8
    %s42 = scalar_lea.vmem %s2, %s41
    %s43 = sadd.s32 0, 0
    %p44 = scmp.lt.s32.totalorder %s43, 0
    %s45 = scalar_select %p44, %s43, 0
    %s46 = smul.u32 125, %s45
    %p48 = scmp.eq.s32.totalorder 0, 0
    // Predicated region
    $region14: #{tpu_custom_call.1} parent=1 // pred_check
      %p49 = pneg %p48
    $region15: #{tpu_custom_call.1} parent=1 // pred_check_branch
      %51 = sbr.rel (%p49) target = $region17
    $region16: #{tpu_custom_call.1} parent=1 // pred_region
      %vm52 = vcmask 523264
      %53 = vst.msk [vmem:[#allocation3] sm:$0xff] %vm52, 0.0
      %v54 = vlaneseq
      %v55 = vand.u32 %v54, 127
      %v56 = vadd.s32 %v55, 128
      %v57 = vadd.s32 %v55, 256
      %v58 = vadd.s32 %v55, 384
      %v59 = vadd.s32 %v55, 512
      %v60 = vadd.s32 %v55, 640
      %v61 = vadd.s32 %v55, 768
      %v62 = vadd.s32 %v55, 896
      %63 = vst [vmem:[#allocation2] sm:$0xff] %v55
      %64 = vst [vmem:[#allocation2 + $0x8] sm:$0xff] %v56
      %65 = vst [vmem:[#allocation2 + $0x10] sm:$0xff] %v57
      %66 = vst [vmem:[#allocation2 + $0x18] sm:$0xff] %v58
      %67 = vst [vmem:[#allocation2 + $0x20] sm:$0xff] %v59
      %68 = vst [vmem:[#allocation2 + $0x28] sm:$0xff] %v60
      %69 = vst [vmem:[#allocation2 + $0x30] sm:$0xff] %v61
      %vm70 = vcmask 850944
      %71 = vst.msk [vmem:[#allocation2 + $0x38] sm:$0xff] %vm70, %v62
    $region17: #{tpu_custom_call.1} parent=1 // pred_fallthru
      _
    %s72 = sadd.s32 0, 0
    %s73 = smul.u32 %s72, 1000
    %v74 = vld [vmem:[#allocation2] sm:$0xff]
    %v75 = vld [vmem:[#allocation2 + $0x8] sm:$0xff]
    %v76 = vld [vmem:[#allocation2 + $0x10] sm:$0xff]
    %v77 = vld [vmem:[#allocation2 + $0x18] sm:$0xff]
    %v78 = vld [vmem:[#allocation2 + $0x20] sm:$0xff]
    %v79 = vld [vmem:[#allocation2 + $0x28] sm:$0xff]
    %v80 = vld [vmem:[#allocation2 + $0x30] sm:$0xff]
    %v81 = vld [vmem:[#allocation2 + $0x38] sm:$0xff]
    %v82 = vstv %s73
    %v83 = vadd.s32 %v82, %v74
    %v84 = vadd.s32 %v82, %v75
    %v85 = vadd.s32 %v82, %v76
    %v86 = vadd.s32 %v82, %v77
    %v87 = vadd.s32 %v82, %v78
    %v88 = vadd.s32 %v82, %v79
    %v89 = vadd.s32 %v82, %v80
    %v90 = vadd.s32 %v82, %v81
    %v91 = vld [vmem:[%s0] sm:$0xff]
    %92 = vset.pattern.permute.xlu0 0
    %93 = vperm.xlu0 %92, %v91
    %v94 = vpop.permute.xlu0 %93
    %vm95 = vcmp.ge.s32.totalorder %v83, %v94
    %vm96 = vcmp.ge.s32.totalorder %v84, %v94
    %vm97 = vcmp.ge.s32.totalorder %v85, %v94
    %vm98 = vcmp.ge.s32.totalorder %v86, %v94
    %vm99 = vcmp.ge.s32.totalorder %v87, %v94
    %vm100 = vcmp.ge.s32.totalorder %v88, %v94
    %vm101 = vcmp.ge.s32.totalorder %v89, %v94
    %vm102 = vcmp.ge.s32.totalorder %v90, %v94
    %v103 = vld [vmem:[%s1] sm:$0xff]
    %104 = vset.pattern.permute.xlu0 0
    %105 = vperm.xlu0 %104, %v103
    %v106 = vpop.permute.xlu0 %105
    %vm107 = vcmp.lt.s32.totalorder %v83, %v106
    %vm108 = vcmp.lt.s32.totalorder %v84, %v106
    %vm109 = vcmp.lt.s32.totalorder %v85, %v106
    %vm110 = vcmp.lt.s32.totalorder %v86, %v106
    %vm111 = vcmp.lt.s32.totalorder %v87, %v106
    %vm112 = vcmp.lt.s32.totalorder %v88, %v106
    %vm113 = vcmp.lt.s32.totalorder %v89, %v106
    %vm114 = vcmp.lt.s32.totalorder %v90, %v106
    %vm115 = vmand %vm95, %vm107
    %vm116 = vmand %vm96, %vm108
    %vm117 = vmand %vm97, %vm109
    %vm118 = vmand %vm98, %vm110
    %vm119 = vmand %vm99, %vm111
    %vm120 = vmand %vm100, %vm112
    %vm121 = vmand %vm101, %vm113
    %vm122 = vmand %vm102, %vm114
    %v123 = vsel %vm115, 1.0, 0.0
    %v124 = vsel %vm116, 1.0, 0.0
    %v125 = vsel %vm117, 1.0, 0.0
    %v126 = vsel %vm118, 1.0, 0.0
    %v127 = vsel %vm119, 1.0, 0.0
    %v128 = vsel %vm120, 1.0, 0.0
    %v129 = vsel %vm121, 1.0, 0.0
    %v130 = vsel %vm122, 1.0, 0.0
    %v131 = vpack.c.bf16 %v123, %v123
    %v132 = vpack.c.bf16 %v124, %v124
    %v133 = vpack.c.bf16 %v125, %v125
    %v134 = vpack.c.bf16 %v126, %v126
    %v135 = vpack.c.bf16 %v127, %v127
    %v136 = vpack.c.bf16 %v128, %v128
    %v137 = vpack.c.bf16 %v129, %v129
    %v138 = vpack.c.bf16 %v130, %v130
    %v139 = vld [vmem:[%s42] sm:$0xff]
    %v140 = vld [vmem:[%s42 + $0x8] sm:$0xff]
    %v141 = vld [vmem:[%s42 + $0x10] sm:$0xff]
    %v142 = vld [vmem:[%s42 + $0x18] sm:$0xff]
    %v143 = vld [vmem:[%s42 + $0x20] sm:$0xff]
    %v144 = vld [vmem:[%s42 + $0x28] sm:$0xff]
    %v145 = vld [vmem:[%s42 + $0x30] sm:$0xff]
    %v146 = vld [vmem:[%s42 + $0x38] sm:$0xff]
    %v147 = vld [vmem:[%s42 + $0x40] sm:$0xff]
    %v148 = vld [vmem:[%s42 + $0x48] sm:$0xff]
    %v149 = vld [vmem:[%s42 + $0x50] sm:$0xff]
    %v150 = vld [vmem:[%s42 + $0x58] sm:$0xff]
    %v151 = vld [vmem:[%s42 + $0x60] sm:$0xff]
    %v152 = vld [vmem:[%s42 + $0x68] sm:$0xff]
    %v153 = vld [vmem:[%s42 + $0x70] sm:$0xff]
    %v154 = vld [vmem:[%s42 + $0x78] sm:$0xff]
    %v155 = vld [vmem:[%s42 + $0x80] sm:$0xff]
    %v156 = vld [vmem:[%s42 + $0x88] sm:$0xff]
    %v157 = vld [vmem:[%s42 + $0x90] sm:$0xff]
    %v158 = vld [vmem:[%s42 + $0x98] sm:$0xff]
    %v159 = vld [vmem:[%s42 + $0xa0] sm:$0xff]
    %v160 = vld [vmem:[%s42 + $0xa8] sm:$0xff]
    %v161 = vld [vmem:[%s42 + $0xb0] sm:$0xff]
    %v162 = vld [vmem:[%s42 + $0xb8] sm:$0xff]
    %v163 = vld [vmem:[%s42 + $0xc0] sm:$0xff]
    %v164 = vld [vmem:[%s42 + $0xc8] sm:$0xff]
    %v165 = vld [vmem:[%s42 + $0xd0] sm:$0xff]
    %v166 = vld [vmem:[%s42 + $0xd8] sm:$0xff]
    %v167 = vld [vmem:[%s42 + $0xe0] sm:$0xff]
    %v168 = vld [vmem:[%s42 + $0xe8] sm:$0xff]
    %v169 = vld [vmem:[%s42 + $0xf0] sm:$0xff]
    %v170 = vld [vmem:[%s42 + $0xf8] sm:$0xff]
    %v171 = vld [vmem:[%s42 + $0x100] sm:$0xff]
    %v172 = vld [vmem:[%s42 + $0x108] sm:$0xff]
    %v173 = vld [vmem:[%s42 + $0x110] sm:$0xff]
    %v174 = vld [vmem:[%s42 + $0x118] sm:$0xff]
    %v175 = vld [vmem:[%s42 + $0x120] sm:$0xff]
    %v176 = vld [vmem:[%s42 + $0x128] sm:$0xff]
    %v177 = vld [vmem:[%s42 + $0x130] sm:$0xff]
    %v178 = vld [vmem:[%s42 + $0x138] sm:$0xff]
    %v179 = vld [vmem:[%s42 + $0x140] sm:$0xff]
    %v180 = vld [vmem:[%s42 + $0x148] sm:$0xff]
    %v181 = vld [vmem:[%s42 + $0x150] sm:$0xff]
    %v182 = vld [vmem:[%s42 + $0x158] sm:$0xff]
    %v183 = vld [vmem:[%s42 + $0x160] sm:$0xff]
    %v184 = vld [vmem:[%s42 + $0x168] sm:$0xff]
    %v185 = vld [vmem:[%s42 + $0x170] sm:$0xff]
    %v186 = vld [vmem:[%s42 + $0x178] sm:$0xff]
    %v187 = vld [vmem:[%s42 + $0x180] sm:$0xff]
    %v188 = vld [vmem:[%s42 + $0x188] sm:$0xff]
    %v189 = vld [vmem:[%s42 + $0x190] sm:$0xff]
    %v190 = vld [vmem:[%s42 + $0x198] sm:$0xff]
    %v191 = vld [vmem:[%s42 + $0x1a0] sm:$0xff]
    %v192 = vld [vmem:[%s42 + $0x1a8] sm:$0xff]
    %v193 = vld [vmem:[%s42 + $0x1b0] sm:$0xff]
    %v194 = vld [vmem:[%s42 + $0x1b8] sm:$0xff]
    %v195 = vld [vmem:[%s42 + $0x1c0] sm:$0xff]
    %v196 = vld [vmem:[%s42 + $0x1c8] sm:$0xff]
    %v197 = vld [vmem:[%s42 + $0x1d0] sm:$0xff]
    %v198 = vld [vmem:[%s42 + $0x1d8] sm:$0xff]
    %v199 = vld [vmem:[%s42 + $0x1e0] sm:$0xff]
    %v200 = vld [vmem:[%s42 + $0x1e8] sm:$0xff]
    %v201 = vld [vmem:[%s42 + $0x1f0] sm:$0xff]
    %v202 = vld [vmem:[%s42 + $0x1f8] sm:$0xff]
    %v203 = vld [vmem:[%s42 + $0x200] sm:$0xff]
    %v204 = vld [vmem:[%s42 + $0x208] sm:$0xff]
    %v205 = vld [vmem:[%s42 + $0x210] sm:$0xff]
    %v206 = vld [vmem:[%s42 + $0x218] sm:$0xff]
    %v207 = vld [vmem:[%s42 + $0x220] sm:$0xff]
    %v208 = vld [vmem:[%s42 + $0x228] sm:$0xff]
    %v209 = vld [vmem:[%s42 + $0x230] sm:$0xff]
    %v210 = vld [vmem:[%s42 + $0x238] sm:$0xff]
    %v211 = vld [vmem:[%s42 + $0x240] sm:$0xff]
    %v212 = vld [vmem:[%s42 + $0x248] sm:$0xff]
    %v213 = vld [vmem:[%s42 + $0x250] sm:$0xff]
    %v214 = vld [vmem:[%s42 + $0x258] sm:$0xff]
    %v215 = vld [vmem:[%s42 + $0x260] sm:$0xff]
    %v216 = vld [vmem:[%s42 + $0x268] sm:$0xff]
    %v217 = vld [vmem:[%s42 + $0x270] sm:$0xff]
    %v218 = vld [vmem:[%s42 + $0x278] sm:$0xff]
    %v219 = vld [vmem:[%s42 + $0x280] sm:$0xff]
    %v220 = vld [vmem:[%s42 + $0x288] sm:$0xff]
    %v221 = vld [vmem:[%s42 + $0x290] sm:$0xff]
    %v222 = vld [vmem:[%s42 + $0x298] sm:$0xff]
    %v223 = vld [vmem:[%s42 + $0x2a0] sm:$0xff]
    %v224 = vld [vmem:[%s42 + $0x2a8] sm:$0xff]
    %v225 = vld [vmem:[%s42 + $0x2b0] sm:$0xff]
    %v226 = vld [vmem:[%s42 + $0x2b8] sm:$0xff]
    %v227 = vld [vmem:[%s42 + $0x2c0] sm:$0xff]
    %v228 = vld [vmem:[%s42 + $0x2c8] sm:$0xff]
    %v229 = vld [vmem:[%s42 + $0x2d0] sm:$0xff]
    %v230 = vld [vmem:[%s42 + $0x2d8] sm:$0xff]
    %v231 = vld [vmem:[%s42 + $0x2e0] sm:$0xff]
    %v232 = vld [vmem:[%s42 + $0x2e8] sm:$0xff]
    %v233 = vld [vmem:[%s42 + $0x2f0] sm:$0xff]
    %v234 = vld [vmem:[%s42 + $0x2f8] sm:$0xff]
    %v235 = vld [vmem:[%s42 + $0x300] sm:$0xff]
    %v236 = vld [vmem:[%s42 + $0x308] sm:$0xff]
    %v237 = vld [vmem:[%s42 + $0x310] sm:$0xff]
    %v238 = vld [vmem:[%s42 + $0x318] sm:$0xff]
    %v239 = vld [vmem:[%s42 + $0x320] sm:$0xff]
    %v240 = vld [vmem:[%s42 + $0x328] sm:$0xff]
    %v241 = vld [vmem:[%s42 + $0x330] sm:$0xff]
    %v242 = vld [vmem:[%s42 + $0x338] sm:$0xff]
    %v243 = vld [vmem:[%s42 + $0x340] sm:$0xff]
    %v244 = vld [vmem:[%s42 + $0x348] sm:$0xff]
    %v245 = vld [vmem:[%s42 + $0x350] sm:$0xff]
    %v246 = vld [vmem:[%s42 + $0x358] sm:$0xff]
    %v247 = vld [vmem:[%s42 + $0x360] sm:$0xff]
    %v248 = vld [vmem:[%s42 + $0x368] sm:$0xff]
    %v249 = vld [vmem:[%s42 + $0x370] sm:$0xff]
    %v250 = vld [vmem:[%s42 + $0x378] sm:$0xff]
    %v251 = vld [vmem:[%s42 + $0x380] sm:$0xff]
    %v252 = vld [vmem:[%s42 + $0x388] sm:$0xff]
    %v253 = vld [vmem:[%s42 + $0x390] sm:$0xff]
    %v254 = vld [vmem:[%s42 + $0x398] sm:$0xff]
    %v255 = vld [vmem:[%s42 + $0x3a0] sm:$0xff]
    %v256 = vld [vmem:[%s42 + $0x3a8] sm:$0xff]
    %v257 = vld [vmem:[%s42 + $0x3b0] sm:$0xff]
    %v258 = vld [vmem:[%s42 + $0x3b8] sm:$0xff]
    %v259 = vld [vmem:[%s42 + $0x3c0] sm:$0xff]
    %v260 = vld [vmem:[%s42 + $0x3c8] sm:$0xff]
    %v261 = vld [vmem:[%s42 + $0x3d0] sm:$0xff]
    %v262 = vld [vmem:[%s42 + $0x3d8] sm:$0xff]
    %v263 = vld [vmem:[%s42 + $0x3e0] sm:$0xff]
    %v264 = vld [vmem:[#allocation3] sm:$0xff]
    %v265 = vpack.c.bf16 %v140, %v139
    %v266 = vpack.c.bf16 %v142, %v141
    %v267 = vpack.c.bf16 %v144, %v143
    %v268 = vpack.c.bf16 %v146, %v145
    %v269 = vpack.c.bf16 %v148, %v147
    %v270 = vpack.c.bf16 %v150, %v149
    %v271 = vpack.c.bf16 %v152, %v151
    %v272 = vpack.c.bf16 %v154, %v153
    %v273 = vpack.c.bf16 %v156, %v155
    %v274 = vpack.c.bf16 %v158, %v157
    %v275 = vpack.c.bf16 %v160, %v159
    %v276 = vpack.c.bf16 %v162, %v161
    %v277 = vpack.c.bf16 %v164, %v163
    %v278 = vpack.c.bf16 %v166, %v165
    %v279 = vpack.c.bf16 %v168, %v167
    %v280 = vpack.c.bf16 %v170, %v169
    %v281 = vpack.c.bf16 %v172, %v171
    %v282 = vpack.c.bf16 %v174, %v173
    %v283 = vpack.c.bf16 %v176, %v175
    %v284 = vpack.c.bf16 %v178, %v177
    %v285 = vpack.c.bf16 %v180, %v179
    %v286 = vpack.c.bf16 %v182, %v181
    %v287 = vpack.c.bf16 %v184, %v183
    %v288 = vpack.c.bf16 %v186, %v185
    %v289 = vpack.c.bf16 %v188, %v187
    %v290 = vpack.c.bf16 %v190, %v189
    %v291 = vpack.c.bf16 %v192, %v191
    %v292 = vpack.c.bf16 %v194, %v193
    %v293 = vpack.c.bf16 %v196, %v195
    %v294 = vpack.c.bf16 %v198, %v197
    %v295 = vpack.c.bf16 %v200, %v199
    %v296 = vpack.c.bf16 %v202, %v201
    %v297 = vpack.c.bf16 %v204, %v203
    %v298 = vpack.c.bf16 %v206, %v205
    %v299 = vpack.c.bf16 %v208, %v207
    %v300 = vpack.c.bf16 %v210, %v209
    %v301 = vpack.c.bf16 %v212, %v211
    %v302 = vpack.c.bf16 %v214, %v213
    %v303 = vpack.c.bf16 %v216, %v215
    %v304 = vpack.c.bf16 %v218, %v217
    %v305 = vpack.c.bf16 %v220, %v219
    %v306 = vpack.c.bf16 %v222, %v221
    %v307 = vpack.c.bf16 %v224, %v223
    %v308 = vpack.c.bf16 %v226, %v225
    %v309 = vpack.c.bf16 %v228, %v227
    %v310 = vpack.c.bf16 %v230, %v229
    %v311 = vpack.c.bf16 %v232, %v231
    %v312 = vpack.c.bf16 %v234, %v233
    %v313 = vpack.c.bf16 %v236, %v235
    %v314 = vpack.c.bf16 %v238, %v237
    %v315 = vpack.c.bf16 %v240, %v239
    %v316 = vpack.c.bf16 %v242, %v241
    %v317 = vpack.c.bf16 %v244, %v243
    %v318 = vpack.c.bf16 %v246, %v245
    %v319 = vpack.c.bf16 %v248, %v247
    %v320 = vpack.c.bf16 %v250, %v249
    %v321 = vpack.c.bf16 %v252, %v251
    %v322 = vpack.c.bf16 %v254, %v253
    %v323 = vpack.c.bf16 %v256, %v255
    %v324 = vpack.c.bf16 %v258, %v257
    %v325 = vpack.c.bf16 %v260, %v259
    %v326 = vpack.c.bf16 %v262, %v261
    %v327 = vpack.c.bf16 %v263, %v263
    %vm328 = vcmask 850944
    %v330 = vsel %vm328, %v138, 0
    %vm332 = vcmask 1043456
    %v334 = vsel %vm332, %v327, 0
    %336 = vmatprep.subr.bf16.mxu0 0
    %337 = vmatpush1.bf16.msra.mxu0 %v265
    %338 = vmatprep.subr.bf16.mxu0 0
    %339 = vmatpush1.bf16.msra.mxu0 %v266
    %340 = vmatprep.subr.bf16.mxu0 0
    %341 = vmatpush1.bf16.msra.mxu0 %v267
    %342 = vmatprep.subr.bf16.mxu0 0
    %343 = vmatpush1.bf16.msra.mxu0 %v268
    %344 = vmatprep.subr.bf16.mxu0 0
    %345 = vmatpush1.bf16.msra.mxu0 %v269
    %346 = vmatprep.subr.bf16.mxu0 0
    %347 = vmatpush1.bf16.msra.mxu0 %v270
    %348 = vmatprep.subr.bf16.mxu0 0
    %349 = vmatpush1.bf16.msra.mxu0 %v271
    %350 = vmatprep.subr.bf16.mxu0 0
    %351 = vmatpush1.bf16.msra.mxu0 %v272
    %352 = vmatprep.subr.bf16.mxu0 0
    %353 = vmatpush1.bf16.msra.mxu0 %v273
    %354 = vmatprep.subr.bf16.mxu0 0
    %355 = vmatpush1.bf16.msra.mxu0 %v274
    %356 = vmatprep.subr.bf16.mxu0 0
    %357 = vmatpush1.bf16.msra.mxu0 %v275
    %358 = vmatprep.subr.bf16.mxu0 0
    %359 = vmatpush1.bf16.msra.mxu0 %v276
    %360 = vmatprep.subr.bf16.mxu0 0
    %361 = vmatpush1.bf16.msra.mxu0 %v277
    %362 = vmatprep.subr.bf16.mxu0 0
    %363 = vmatpush1.bf16.msra.mxu0 %v278
    %364 = vmatprep.subr.bf16.mxu0 0
    %365 = vmatpush1.bf16.msra.mxu0 %v279
    %366 = vmatprep.subr.bf16.mxu0 0
    %367 = vmatpush1.bf16.msra.mxu0 %v280
    %368 = vmatprep.mubr.bf16.mxu0 %v132
    %369 = vmatmul.mubr.bf16.gmra.mrb[0].mxu0 %v131
    %v370 = vpop.f32.mrb[0].mxu0
    %v371 = vadd.f32 0.0, %v370
    %v372 = vpop.f32.mrb[0].mxu0
    %v373 = vpop.f32.mrb[0].mxu0
    %v374 = vpop.f32.mrb[0].mxu0
    %375 = vdwg.mxu0
    %376 = vmatprep.subr.bf16.mxu0 0
    %377 = vmatpush1.bf16.msra.mxu0 %v281
    %378 = vmatprep.subr.bf16.mxu0 0
    %379 = vmatpush1.bf16.msra.mxu0 %v282
    %380 = vmatprep.subr.bf16.mxu0 0
    %381 = vmatpush1.bf16.msra.mxu0 %v283
    %382 = vmatprep.subr.bf16.mxu0 0
    %383 = vmatpush1.bf16.msra.mxu0 %v284
    %384 = vmatprep.subr.bf16.mxu0 0
    %385 = vmatpush1.bf16.msra.mxu0 %v285
    %386 = vmatprep.subr.bf16.mxu0 0
    %387 = vmatpush1.bf16.msra.mxu0 %v286
    %388 = vmatprep.subr.bf16.mxu0 0
    %389 = vmatpush1.bf16.msra.mxu0 %v287
    %390 = vmatprep.subr.bf16.mxu0 0
    %391 = vmatpush1.bf16.msra.mxu0 %v288
    %392 = vmatprep.subr.bf16.mxu0 0
    %393 = vmatpush1.bf16.msra.mxu0 %v289
    %394 = vmatprep.subr.bf16.mxu0 0
    %395 = vmatpush1.bf16.msra.mxu0 %v290
    %396 = vmatprep.subr.bf16.mxu0 0
    %397 = vmatpush1.bf16.msra.mxu0 %v291
    %398 = vmatprep.subr.bf16.mxu0 0
    %399 = vmatpush1.bf16.msra.mxu0 %v292
    %400 = vmatprep.subr.bf16.mxu0 0
    %401 = vmatpush1.bf16.msra.mxu0 %v293
    %402 = vmatprep.subr.bf16.mxu0 0
    %403 = vmatpush1.bf16.msra.mxu0 %v294
    %404 = vmatprep.subr.bf16.mxu0 0
    %405 = vmatpush1.bf16.msra.mxu0 %v295
    %406 = vmatprep.subr.bf16.mxu0 0
    %407 = vmatpush1.bf16.msra.mxu0 %v296
    %408 = vmatprep.mubr.bf16.mxu0 %v134
    %409 = vmatmul.mubr.bf16.gmra.mrb[0].mxu0 %v133
    %v410 = vpop.f32.mrb[0].mxu0
    %v411 = vadd.f32 %v371, %v410
    %v412 = vpop.f32.mrb[0].mxu0
    %v413 = vpop.f32.mrb[0].mxu0
    %v414 = vpop.f32.mrb[0].mxu0
    %415 = vdwg.mxu0
    %416 = vmatprep.subr.bf16.mxu0 0
    %417 = vmatpush1.bf16.msra.mxu0 %v297
    %418 = vmatprep.subr.bf16.mxu0 0
    %419 = vmatpush1.bf16.msra.mxu0 %v298
    %420 = vmatprep.subr.bf16.mxu0 0
    %421 = vmatpush1.bf16.msra.mxu0 %v299
    %422 = vmatprep.subr.bf16.mxu0 0
    %423 = vmatpush1.bf16.msra.mxu0 %v300
    %424 = vmatprep.subr.bf16.mxu0 0
    %425 = vmatpush1.bf16.msra.mxu0 %v301
    %426 = vmatprep.subr.bf16.mxu0 0
    %427 = vmatpush1.bf16.msra.mxu0 %v302
    %428 = vmatprep.subr.bf16.mxu0 0
    %429 = vmatpush1.bf16.msra.mxu0 %v303
    %430 = vmatprep.subr.bf16.mxu0 0
    %431 = vmatpush1.bf16.msra.mxu0 %v304
    %432 = vmatprep.subr.bf16.mxu0 0
    %433 = vmatpush1.bf16.msra.mxu0 %v305
    %434 = vmatprep.subr.bf16.mxu0 0
    %435 = vmatpush1.bf16.msra.mxu0 %v306
    %436 = vmatprep.subr.bf16.mxu0 0
    %437 = vmatpush1.bf16.msra.mxu0 %v307
    %438 = vmatprep.subr.bf16.mxu0 0
    %439 = vmatpush1.bf16.msra.mxu0 %v308
    %440 = vmatprep.subr.bf16.mxu0 0
    %441 = vmatpush1.bf16.msra.mxu0 %v309
    %442 = vmatprep.subr.bf16.mxu0 0
    %443 = vmatpush1.bf16.msra.mxu0 %v310
    %444 = vmatprep.subr.bf16.mxu0 0
    %445 = vmatpush1.bf16.msra.mxu0 %v311
    %446 = vmatprep.subr.bf16.mxu0 0
    %447 = vmatpush1.bf16.msra.mxu0 %v312
    %448 = vmatprep.mubr.bf16.mxu0 %v136
    %449 = vmatmul.mubr.bf16.gmra.mrb[0].mxu0 %v135
    %v450 = vpop.f32.mrb[0].mxu0
    %v451 = vadd.f32 %v411, %v450
    %v452 = vpop.f32.mrb[0].mxu0
    %v453 = vpop.f32.mrb[0].mxu0
    %v454 = vpop.f32.mrb[0].mxu0
    %455 = vdwg.mxu0
    %456 = vmatprep.subr.bf16.mxu0 0
    %457 = vmatpush1.bf16.msra.mxu0 %v313
    %458 = vmatprep.subr.bf16.mxu0 0
    %459 = vmatpush1.bf16.msra.mxu0 %v314
    %460 = vmatprep.subr.bf16.mxu0 0
    %461 = vmatpush1.bf16.msra.mxu0 %v315
    %462 = vmatprep.subr.bf16.mxu0 0
    %463 = vmatpush1.bf16.msra.mxu0 %v316
    %464 = vmatprep.subr.bf16.mxu0 0
    %465 = vmatpush1.bf16.msra.mxu0 %v317
    %466 = vmatprep.subr.bf16.mxu0 0
    %467 = vmatpush1.bf16.msra.mxu0 %v318
    %468 = vmatprep.subr.bf16.mxu0 0
    %469 = vmatpush1.bf16.msra.mxu0 %v319
    %470 = vmatprep.subr.bf16.mxu0 0
    %471 = vmatpush1.bf16.msra.mxu0 %v320
    %472 = vmatprep.subr.bf16.mxu0 0
    %473 = vmatpush1.bf16.msra.mxu0 %v321
    %474 = vmatprep.subr.bf16.mxu0 0
    %475 = vmatpush1.bf16.msra.mxu0 %v322
    %476 = vmatprep.subr.bf16.mxu0 0
    %477 = vmatpush1.bf16.msra.mxu0 %v323
    %478 = vmatprep.subr.bf16.mxu0 0
    %479 = vmatpush1.bf16.msra.mxu0 %v324
    %480 = vmatprep.subr.bf16.mxu0 0
    %481 = vmatpush1.bf16.msra.mxu0 %v325
    %482 = vmatprep.subr.bf16.mxu0 0
    %483 = vmatpush1.bf16.msra.mxu0 %v326
    %484 = vmatprep.subr.bf16.mxu0 0
    %485 = vmatpush1.bf16.msra.mxu0 %v334
    %486 = vmatprep.subr.bf16.mxu0 0
    %487 = vmatpush1.bf16.msra.mxu0 0
    %488 = vmatprep.mubr.bf16.mxu0 %v330
    %489 = vmatmul.mubr.bf16.gmra.mrb[0].mxu0 %v137
    %v490 = vpop.f32.mrb[0].mxu0
    %v491 = vadd.f32 %v451, %v490
    %v492 = vpop.f32.mrb[0].mxu0
    %v493 = vpop.f32.mrb[0].mxu0
    %v494 = vpop.f32.mrb[0].mxu0
    %495 = vdwg.mxu0
    %v496 = vadd.f32 %v264, %v491
    %vm497 = vcmask 523264
    %498 = vst.msk [vmem:[#allocation3] sm:$0xff] %vm497, %v496
    // Predicated region
    $region18: #{tpu_custom_call.1} parent=1 // pred_check
      _
    $region19: #{tpu_custom_call.1} parent=1 // pred_check_branch
      %500 = sbr.rel (0) target = $region21
    $region20: #{tpu_custom_call.1} parent=1 // pred_region
      %s502 = ssub.s32 128, 128
      %503 = vsyncadd [#allocation4], %s502
      %s505 = sshll.u32 [#allocation3], 4
      %s506 = int_to_ptr.vmem [resolvable:$true] %s505
      %508 = dma.vmem_to_hbm [thread:$0]  %s506, 128, %s3, [#allocation4]
    $region21: #{tpu_custom_call.1} parent=1 // pred_fallthru
      _
    // Predicated region
    $region22: #{tpu_custom_call.1} parent=1 // pred_check
      _
    $region23: #{tpu_custom_call.1} parent=1 // pred_check_branch
      %510 = sbr.rel (0) target = $region25
    $region24: #{tpu_custom_call.1} parent=1 // pred_region
      %511 = dma.done [#allocation4], 128
    $region25: #{tpu_custom_call.1} parent=1 // pred_fallthru
      _
    %512 = vsyncpa [#allocation4], 1

</llo_original>
